<compile_context>
chip_gen: v5e
topology: v5e:2x2
jax: 0.10.0
libtpu: 0.0.40
codegen_flags: <defaults>
</compile_context>

<pallas_src>
import jax
import jax.numpy as jnp
from jax import lax
from jax.experimental import pallas as pl
from jax.experimental.pallas import tpu as pltpu

BN_EPS = 1e-5
LEAKY_SLOPE = 0.01

# Row layout of the packed small-parameter array (shape [5, H1]):
_ROW_B1 = 0
_ROW_GAMMA = 1
_ROW_BETA = 2
_ROW_W2 = 3      # the single output row of linear2 (D_out == 1)
_ROW_B2 = 4      # scalar bias of linear2 stored at column 0


def ffn_kernel(x_ref, w1t_ref, p_ref, o_ref):
    # Everything fits in one VMEM tile at these sizes: do the whole forward pass here.
    x = x_ref[...]                                  # [N, D_in] f32
    w1t = w1t_ref[...]                              # [D_in, H1] (pre-transposed in wrapper)

    b1 = p_ref[_ROW_B1:_ROW_B1 + 1, :]              # [1, H1]
    gamma = p_ref[_ROW_GAMMA:_ROW_GAMMA + 1, :]     # [1, H1]
    beta = p_ref[_ROW_BETA:_ROW_BETA + 1, :]        # [1, H1]
    w2 = p_ref[_ROW_W2:_ROW_W2 + 1, :]              # [1, H1]
    b2 = p_ref[_ROW_B2:_ROW_B2 + 1, 0:1]            # [1, 1]

    # linear1: canonical MXU layout, DEFAULT precision, f32 accumulation -> [N, H1]
    h = jnp.dot(x, w1t, preferred_element_type=jnp.float32) + b1

    # BatchNorm1d over the batch axis (training-mode statistics, biased variance), fused form:
    #   hc = h - mean (computed once, reused for variance)
    #   h_norm = hc * (gamma * rsqrt(var + eps)) + beta        (rsqrt -> EUP slot)
    mean = jnp.mean(h, axis=0, keepdims=True)       # [1, H1]
    hc = h - mean                                   # [N, H1]
    var = jnp.mean(hc * hc, axis=0, keepdims=True)  # [1, H1]
    scale = gamma * lax.rsqrt(var + BN_EPS)         # [1, H1]
    h_norm = hc * scale + beta                      # [N, H1]

    # LeakyReLU (default slope 0.01).
    a = jnp.where(h_norm > 0, h_norm, LEAKY_SLOPE * h_norm)

    # linear2 with D_out == 1: per-row dot product via VPU multiply + lane reduce
    # (avoids a second single-column MXU launch). Output [N, 1].
    y = jnp.sum(a * w2, axis=-1, keepdims=True) + b2
    o_ref[...] = y.astype(o_ref.dtype)
    # Note: D_out=1 means a masked partial store; irrelevant at [N,1]. If D_out ever grows,
    # present a lane-dense (multiple-of-128) output slab instead.


def feedforward_net(x, w1, b1, gamma, beta, w2, b2):
    """x: [N, D_in]; w1: [H1, D_in]; w2: [D_out, H1] (PyTorch nn.Linear layout). D_out must be 1."""
    n, d_in = x.shape
    h1 = w1.shape[0]
    d_out = w2.shape[0]
    assert d_out == 1, "this kernel specializes linear2 for D_out == 1 (as in the module spec)"

    # One-time wrapper-side layout prep (plain XLA ops, outside the kernel):
    #   * transpose W1 to [D_in, H1] so the kernel's dot needs no in-kernel transpose,
    #   * pack the five tiny per-feature vectors into a single [5, H1] operand (one DMA).
    w1t = w1.T
    b2_row = jnp.zeros((h1,), jnp.float32).at[0].set(b2[0])
    packed = jnp.stack(
        [b1, gamma, beta, w2[0].astype(jnp.float32), b2_row], axis=0
    ).astype(jnp.float32)                           # [5, H1]

    vmem = pl.BlockSpec(memory_space=pltpu.MemorySpace.VMEM)
    return pl.pallas_call(
        ffn_kernel,
        out_shape=jax.ShapeDtypeStruct((n, d_out), jnp.float32),
        in_specs=[vmem, vmem, vmem],
        out_specs=vmem,
    )(x, w1t, packed)


def init_params(key, d_in, h1, d_out):
    """PyTorch-style deterministic init: Linear weights/biases ~ U(-1/sqrt(fan_in), 1/sqrt(fan_in)),
    BatchNorm gamma = 1, beta = 0."""
    k1, k2, k3, k4 = jax.random.split(key, 4)
    bound1 = 1.0 / jnp.sqrt(d_in)
    bound2 = 1.0 / jnp.sqrt(h1)
    w1 = jax.random.uniform(k1, (h1, d_in), jnp.float32, -bound1, bound1)
    b1 = jax.random.uniform(k2, (h1,), jnp.float32, -bound1, bound1)
    w2 = jax.random.uniform(k3, (d_out, h1), jnp.float32, -bound2, bound2)
    b2 = jax.random.uniform(k4, (d_out,), jnp.float32, -bound2, bound2)
    gamma = jnp.ones((h1,), jnp.float32)
    beta = jnp.zeros((h1,), jnp.float32)
    return w1, b1, gamma, beta, w2, b2


def reference_forward(x, w1, b1, gamma, beta, w2, b2):
    # True-f32 reference (HIGHEST precision dots) for comparison.
    h = lax.dot_general(x, w1, (((1,), (1,)), ((), ())),
                        precision=lax.Precision.HIGHEST) + b1
    mean = jnp.mean(h, axis=0, keepdims=True)
    var = jnp.mean((h - mean) ** 2, axis=0, keepdims=True)
    hn = (h - mean) / jnp.sqrt(var + BN_EPS) * gamma + beta
    a = jnp.where(hn > 0, hn, LEAKY_SLOPE * hn)
    y = lax.dot_general(a, w2, (((1,), (1,)), ((), ())),
                        precision=lax.Precision.HIGHEST) + b2
    return y


if __name__ == "__main__":
    # Small shapes consistent with the module: batch=8 rows, D_in=16 features, H1=20, D_out=1.
    N, D_IN, H1, D_OUT = 8, 16, 20, 1

    key = jax.random.PRNGKey(0)
    kx, kp = jax.random.split(key)
    x = jax.random.normal(kx, (N, D_IN), jnp.float32)
    params = init_params(kp, D_IN, H1, D_OUT)

    y = feedforward_net(x, *params)
    y = jax.block_until_ready(y)

    y_ref = reference_forward(x, *params)
    assert y.shape == (N, D_OUT), y.shape
    # Kernel matmul runs at DEFAULT MXU precision (bf16 passes) vs. true-f32 reference,
    # so the comparison tolerance is loosened accordingly.
    assert jnp.allclose(y, y_ref, atol=5e-2, rtol=5e-2), (y, y_ref)

    print("KERNEL_OK")
</pallas_src>

<mosaic_0001>
module attributes {stable_mosaic.version = 11 : i64} {
  func.func @ffn_kernel(%arg0: memref<8x16xf32, #tpu.memory_space<vmem>>, %arg1: memref<16x20xf32, #tpu.memory_space<vmem>>, %arg2: memref<5x20xf32, #tpu.memory_space<vmem>>, %arg3: memref<8x1xf32, #tpu.memory_space<vmem>>) attributes {dimension_semantics = [], scalar_prefetch = 0 : i64, scratch_operands = 0 : i64, tpu.core_type = #tpu.core_type<tc>} {
    %c0 = arith.constant 0 : index
    %c0_0 = arith.constant 0 : index
    %0 = vector.load %arg0[%c0, %c0_0] : memref<8x16xf32, #tpu.memory_space<vmem>>, vector<8x16xf32>
    %c0_1 = arith.constant 0 : index
    %c0_2 = arith.constant 0 : index
    %1 = vector.load %arg1[%c0_1, %c0_2] : memref<16x20xf32, #tpu.memory_space<vmem>>, vector<16x20xf32>
    %c0_3 = arith.constant 0 : index
    %c0_4 = arith.constant 0 : index
    %2 = vector.load %arg2[%c0_3, %c0_4] : memref<5x20xf32, #tpu.memory_space<vmem>>, vector<1x20xf32>
    %c1 = arith.constant 1 : index
    %c0_5 = arith.constant 0 : index
    %3 = vector.load %arg2[%c1, %c0_5] : memref<5x20xf32, #tpu.memory_space<vmem>>, vector<1x20xf32>
    %c2 = arith.constant 2 : index
    %c0_6 = arith.constant 0 : index
    %4 = vector.load %arg2[%c2, %c0_6] : memref<5x20xf32, #tpu.memory_space<vmem>>, vector<1x20xf32>
    %c3 = arith.constant 3 : index
    %c0_7 = arith.constant 0 : index
    %5 = vector.load %arg2[%c3, %c0_7] : memref<5x20xf32, #tpu.memory_space<vmem>>, vector<1x20xf32>
    %c4 = arith.constant 4 : index
    %c0_8 = arith.constant 0 : index
    %6 = vector.load %arg2[%c4, %c0_8] : memref<5x20xf32, #tpu.memory_space<vmem>>, vector<1x1xf32>
    %cst = arith.constant dense<0.000000e+00> : vector<8x20xf32>
    %7 = tpu.matmul %0, %1, %cst {dimension_numbers = #tpu.dot_dimension_numbers<[1], [0], [0], [1], [0, 0, 1, 1], [], []>} : vector<8x16xf32>, vector<16x20xf32>, vector<8x20xf32> -> vector<8x20xf32>
    %8 = vector.broadcast %2 : vector<1x20xf32> to vector<8x20xf32>
    %9 = arith.addf %7, %8 : vector<8x20xf32>
    %cst_9 = arith.constant dense<0.000000e+00> : vector<20xf32>
    %10 = vector.multi_reduction <add>, %9, %cst_9 [0] : vector<8x20xf32> to vector<20xf32>
    %11 = vector.shape_cast %10 : vector<20xf32> to vector<1x20xf32>
    %cst_10 = arith.constant 8.000000e+00 : f32
    %12 = vector.broadcast %cst_10 : f32 to vector<1x20xf32>
    %13 = arith.divf %11, %12 : vector<1x20xf32>
    %14 = vector.broadcast %13 : vector<1x20xf32> to vector<8x20xf32>
    %15 = arith.subf %9, %14 : vector<8x20xf32>
    %16 = arith.mulf %15, %15 : vector<8x20xf32>
    %cst_11 = arith.constant dense<0.000000e+00> : vector<20xf32>
    %17 = vector.multi_reduction <add>, %16, %cst_11 [0] : vector<8x20xf32> to vector<20xf32>
    %18 = vector.shape_cast %17 : vector<20xf32> to vector<1x20xf32>
    %cst_12 = arith.constant 8.000000e+00 : f32
    %19 = vector.broadcast %cst_12 : f32 to vector<1x20xf32>
    %20 = arith.divf %18, %19 : vector<1x20xf32>
    %cst_13 = arith.constant 9.99999974E-6 : f32
    %21 = vector.broadcast %cst_13 : f32 to vector<1x20xf32>
    %22 = arith.addf %20, %21 : vector<1x20xf32>
    %23 = math.rsqrt %22 : vector<1x20xf32>
    %24 = arith.mulf %3, %23 : vector<1x20xf32>
    %25 = vector.broadcast %24 : vector<1x20xf32> to vector<8x20xf32>
    %26 = arith.mulf %15, %25 : vector<8x20xf32>
    %27 = vector.broadcast %4 : vector<1x20xf32> to vector<8x20xf32>
    %28 = arith.addf %26, %27 : vector<8x20xf32>
    %cst_14 = arith.constant 0.000000e+00 : f32
    %29 = vector.broadcast %cst_14 : f32 to vector<8x20xf32>
    %30 = arith.cmpf ogt, %28, %29 : vector<8x20xf32>
    %cst_15 = arith.constant 0.00999999977 : f32
    %31 = vector.broadcast %cst_15 : f32 to vector<8x20xf32>
    %32 = arith.mulf %31, %28 : vector<8x20xf32>
    %33 = arith.select %30, %28, %32 : vector<8x20xi1>, vector<8x20xf32>
    %34 = vector.broadcast %5 : vector<1x20xf32> to vector<8x20xf32>
    %35 = arith.mulf %33, %34 : vector<8x20xf32>
    %cst_16 = arith.constant dense<0.000000e+00> : vector<8xf32>
    %36 = vector.multi_reduction <add>, %35, %cst_16 [1] : vector<8x20xf32> to vector<8xf32>
    %37 = vector.shape_cast %36 : vector<8xf32> to vector<8x1xf32>
    %38 = vector.broadcast %6 : vector<1x1xf32> to vector<8x1xf32>
    %39 = arith.addf %37, %38 : vector<8x1xf32>
    %c0_17 = arith.constant 0 : index
    %c0_18 = arith.constant 0 : index
    %40 = vector.load %arg3[%c0_17, %c0_18] : memref<8x1xf32, #tpu.memory_space<vmem>>, vector<8x1xf32>
    tpu.vector_store %arg3[%c0_17, %c0_18], %39 {strides = array<i32>} : memref<8x1xf32, #tpu.memory_space<vmem>>, vector<8x1xf32>,
    return
  }
}

</mosaic_0001>

<llo_original>
// kernel: tpu_custom_call.1
$region0: #{tpu_custom_call.1}
  #allocation0 [shape = 'u32[]', space=smem, size = 0x4, offset = 0x4, fixed_abs, tag = 'smem constant byte address 0x4 - core index']
  #allocation1 [shape = 'u32[72,128]{1,0:T(1,128)}', space=vmem, size = 0x9000, scoped, tag = 'internal scratch']
  %s0 = inlined_call_operand.hbm [shape: f32[8,16], index: 0, kind: input, shape index: {}]
  %s1 = inlined_call_operand.hbm [shape: f32[16,20], index: 1, kind: input, shape index: {}]
  %s2 = inlined_call_operand.hbm [shape: f32[5,20], index: 2, kind: input, shape index: {}]
  %s3 = inlined_call_operand.vmem [shape: f32[8,1], index: 3, kind: output, shape index: {}]
  %s4 = sld [smem:[#allocation0]]
  $region34: #{tpu_custom_call.1} parent=0
    _
  %s6 = ssub.s32 1, %s4
  %s7 = scalar_select 0, %s6, %s4
  $region1: #{tpu_custom_call.1} parent=0
    #allocation2 [shape = 'u8[4096]{0}', space=vmem, size = 0x1000, scoped, tag = 'input window, operand 0, single buffered']
    #allocation3 [shape = 's32[1]{0}', space=sflag, size = 0x4, scoped, tag = 'scoped memory for tpu_custom_call.1']
    #allocation4 [shape = 'u8[8192]{0}', space=vmem, size = 0x2000, scoped, tag = 'input window, operand 1, single buffered']
    #allocation5 [shape = 's32[1]{0}', space=sflag, size = 0x4, scoped, tag = 'scoped memory for tpu_custom_call.1']
    #allocation6 [shape = 'u8[4096]{0}', space=vmem, size = 0x1000, scoped, tag = 'input window, operand 2, single buffered']
    %8 = vsyncpa [#allocation3], 0
    %9 = vsyncpa [#allocation5], 0
    // Predicated region
    $region2: #{tpu_custom_call.1} parent=1 // pred_check
      _
    $region3: #{tpu_custom_call.1} parent=1 // pred_check_branch
      %11 = sbr.rel (0) target = $region5
    $region4: #{tpu_custom_call.1} parent=1 // pred_region
      %13 = vsyncadd [#allocation3], 0
      %s15 = sshll.u32 %s0, 4
      %s16 = int_to_ptr.hbm [resolvable:$true] %s15
      %s17 = sshll.u32 [#allocation2], 4
      %s18 = int_to_ptr.vmem [resolvable:$true] %s17
      %20 = dma.hbm_to_vmem [thread:$0]  %s16, 128, %s18, [#allocation3]
    $region5: #{tpu_custom_call.1} parent=1 // pred_fallthru
      _
    // Predicated region
    $region6: #{tpu_custom_call.1} parent=1 // pred_check
      _
    $region7: #{tpu_custom_call.1} parent=1 // pred_check_branch
      %22 = sbr.rel (0) target = $region9
    $region8: #{tpu_custom_call.1} parent=1 // pred_region
      %24 = vsyncadd [#allocation5], 0
      %s25 = sshll.u32 %s1, 4
      %s26 = int_to_ptr.hbm [resolvable:$true] %s25
      %s27 = sshll.u32 [#allocation4], 4
      %s28 = int_to_ptr.vmem [resolvable:$true] %s27
      %33 = dma.hbm_to_vmem [thread:$0]  %s26, 256, %s28, [#allocation5], 128, 128, 8
    $region9: #{tpu_custom_call.1} parent=1 // pred_fallthru
      _
    // Predicated region
    $region10: #{tpu_custom_call.1} parent=1 // pred_check
      _
    $region11: #{tpu_custom_call.1} parent=1 // pred_check_branch
      %35 = sbr.rel (0) target = $region13
    $region12: #{tpu_custom_call.1} parent=1 // pred_region
      %37 = vsyncadd [#allocation5], 0
      %s39 = sshll.u32 %s2, 4
      %s40 = int_to_ptr.hbm [resolvable:$true] %s39
      %s41 = sshll.u32 [#allocation6], 4
      %s42 = int_to_ptr.vmem [resolvable:$true] %s41
      %44 = dma.hbm_to_vmem [thread:$0]  %s40, 128, %s42, [#allocation5]
    $region13: #{tpu_custom_call.1} parent=1 // pred_fallthru
      _
    // Predicated region
    $region14: #{tpu_custom_call.1} parent=1 // pred_check
      _
    $region15: #{tpu_custom_call.1} parent=1 // pred_check_branch
      %46 = sbr.rel (0) target = $region17
    $region16: #{tpu_custom_call.1} parent=1 // pred_region
      %48 = dma.done [#allocation3], 128
    $region17: #{tpu_custom_call.1} parent=1 // pred_fallthru
      _
    // Predicated region
    $region18: #{tpu_custom_call.1} parent=1 // pred_check
      _
    $region19: #{tpu_custom_call.1} parent=1 // pred_check_branch
      %50 = sbr.rel (0) target = $region21
    $region20: #{tpu_custom_call.1} parent=1 // pred_region
      %52 = dma.done [#allocation5], 256
    $region21: #{tpu_custom_call.1} parent=1 // pred_fallthru
      _
    // Predicated region
    $region22: #{tpu_custom_call.1} parent=1 // pred_check
      _
    $region23: #{tpu_custom_call.1} parent=1 // pred_check_branch
      %54 = sbr.rel (0) target = $region25
    $region24: #{tpu_custom_call.1} parent=1 // pred_region
      %56 = dma.done [#allocation5], 128
    $region25: #{tpu_custom_call.1} parent=1 // pred_fallthru
      _
    %v57 = vld [vmem:[#allocation2] sm:$0xff]
    %v58 = vld [vmem:[#allocation4] sm:$0xff]
    %v59 = vld [vmem:[#allocation4 + $0x8] sm:$0xff]
    %v60 = vld [vmem:[#allocation6] sm:$0x1]
    %v61 = vld [vmem:[#allocation6 + $0x1] sm:$0x1]
    %v62 = vld [vmem:[#allocation6 + $0x2] sm:$0x1]
    %v63 = vld [vmem:[#allocation6 + $0x3] sm:$0x1]
    %v64 = vld [vmem:[#allocation6 + $0x4] sm:$0x1]
    %v65 = vperm.slane %v60, 0
    %vm66 = vcmask 130048
    %v68 = vsel %vm66, %v57, 0
    %70 = vmatpush.msra.mxu0 0.0
    %71 = vmatpush.msra.mxu0 0.0
    %72 = vmatpush.msra.mxu0 0.0
    %73 = vmatpush.msra.mxu0 0.0
    %74 = vmatpush.msra.mxu0 0.0
    %75 = vmatpush.msra.mxu0 0.0
    %76 = vmatpush.msra.mxu0 0.0
    %77 = vmatpush.msra.mxu0 0.0
    %78 = vmatpush.msra.mxu0 0.0
    %79 = vmatpush.msra.mxu0 0.0
    %80 = vmatpush.msra.mxu0 0.0
    %81 = vmatpush.msra.mxu0 0.0
    %82 = vmatpush.msra.mxu0 0.0
    %83 = vmatpush.msra.mxu0 0.0
    %84 = vmatpush.msra.mxu0 %v59
    %85 = vmatpush.msra.mxu0 %v58
    %86 = vmatmul.f32.gmra.mxu0 %v68
    %v87 = vpop.f32.mrf.mxu0
    %v88 = vadd.f32 %v65, %v87
    %89 = vdwg.mxu0
    %vm90 = vcmask 162816
    %v91 = vsel %vm90, %v88, 0.0
    %v92 = vrot.slane %v91, 4
    %v93 = vadd.f32 %v91, %v92
    %v94 = vrot.slane %v93, 2
    %v95 = vadd.f32 %v93, %v94
    %v96 = vrot.slane %v95, 1
    %v97 = vadd.f32 %v95, %v96
    %v98 = vrcp.pop 8.0
    %v99 = vmul.f32 8.0, %v98
    %v100 = vsub.f32 1.0, %v99
    %v101 = vmul.f32 %v98, %v100
    %v102 = vadd.f32 %v98, %v101
    %vm103 = vweird.f32 %v98
    %v104 = vsel %vm103, %v98, %v102
    %v105 = vmul.f32 %v97, %v104
    %v106 = vsub.f32 %v88, %v105
    %v107 = vmul.f32 %v106, %v106
    %v108 = vsel %vm90, %v107, 0.0
    %v109 = vrot.slane %v108, 4
    %v110 = vadd.f32 %v108, %v109
    %v111 = vrot.slane %v110, 2
    %v112 = vadd.f32 %v110, %v111
    %v113 = vrot.slane %v112, 1
    %v114 = vadd.f32 %v112, %v113
    %v115 = vmul.f32 %v114, %v104
    %v116 = vadd.f32 %v115, 1e-05
    %v117 = vrsqrt.pop %v116
    %v118 = vmul.f32 %v117, %v116
    %v119 = vmul.f32 %v118, %v117
    %v120 = vmul.f32 0.5, %v119
    %v121 = vsub.f32 1.5, %v120
    %v122 = vmul.f32 %v117, %v121
    %vm123 = vweird.f32 %v116
    %vm124 = vweird.f32 %v117
    %vm125 = vmor %vm123, %vm124
    %v126 = vsel %vm125, %v117, %v122
    %v127 = vmul.f32 %v61, %v126
    %v128 = vperm.slane %v127, 0
    %v129 = vmul.f32 %v106, %v128
    %v130 = vperm.slane %v62, 0
    %v131 = vadd.f32 %v129, %v130
    %vm132 = vcmp.gt.f32.partialorder %v131, 0.0
    %v133 = vmul.f32 %v131, 0.01
    %v134 = vsel %vm132, %v131, %v133
    %v135 = vperm.slane %v63, 0
    %v136 = vmul.f32 %v134, %v135
    %v137 = vsel %vm90, %v136, 0.0
    %138 = vadd.xlane.f32.xlu0 %v137
    %v139 = vpop.xlane.xlu0 %138
    %v140 = vperm.slane %v64, 0
    %v141 = vadd.f32 %v139, %v140
    %vm142 = vcmask 7168
    %143 = vst.msk [vmem:[%s3] sm:$0xff] %vm142, %v141
    // Predicated region
    $region26: #{tpu_custom_call.1} parent=1 // pred_check
      _
    $region27: #{tpu_custom_call.1} parent=1 // pred_check_branch
      %145 = sbr.rel (0) target = $region29
    $region28: #{tpu_custom_call.1} parent=1 // pred_region
      _
    $region29: #{tpu_custom_call.1} parent=1 // pred_fallthru
      _
    // Predicated region
    $region30: #{tpu_custom_call.1} parent=1 // pred_check
      _
    $region31: #{tpu_custom_call.1} parent=1 // pred_check_branch
      %147 = sbr.rel (0) target = $region33
    $region32: #{tpu_custom_call.1} parent=1 // pred_region
      _
    $region33: #{tpu_custom_call.1} parent=1 // pred_fallthru
      _
    %148 = vsyncpa [#allocation3], 1
    %149 = vsyncpa [#allocation5], 1

</llo_original>
